<compile_context>
chip_gen: v7x
topology: tpu7x:2x2x1
jax: 0.10.0
libtpu: 0.0.40
codegen_flags: <defaults>
</compile_context>

<pallas_src>
import jax
import jax.numpy as jnp
from jax.experimental import pallas as pl
from jax.experimental.pallas import tpu as pltpu


def _round_up(x, m):
    return ((x + m - 1) // m) * m


def mlp_kernel(uid_ref, iid_ref,                 # (1, TB) int32, batch on lanes
               tabT_ref,                         # (2E, n_users+n_items) combined table^T
               w1T_ref, b1_ref, w2_ref, b2_ref,  # params (VMEM resident)
               out_ref):                         # (1, TB) ratings
    uid = uid_ref[...]                           # (1, TB) user row in combined table
    iid = iid_ref[...]                           # (1, TB) item row (already offset by n_users)
    n_tab = tabT_ref.shape[1]
    tb = uid.shape[1]

    # One-hot gather on the MXU: each column has a 1 at its user row and a 1
    # at its (offset) item row; the block-diagonal table turns that directly
    # into the concatenated embedding [e_user; e_item] for that sample.
    rows = jax.lax.broadcasted_iota(jnp.int32, (n_tab, tb), 0)
    onehot = ((rows == uid) | (rows == iid)).astype(jnp.float32)        # (n_tab, TB)
    xT = jnp.dot(tabT_ref[...], onehot, preferred_element_type=jnp.float32)  # (2E, TB)

    # FC1 + ReLU (dropout with p=False is identity).
    hT = jnp.dot(w1T_ref[...], xT, preferred_element_type=jnp.float32) + b1_ref[...]
    hT = jnp.maximum(hT, 0.0)                                           # (H, TB)

    # Output layer: N=1 matmul replaced by VPU multiply + sublane reduction.
    logitT = jnp.sum(hT * w2_ref[...], axis=0, keepdims=True) + b2_ref[...]  # (1, TB)
    out_ref[...] = jax.nn.sigmoid(logitT)


def mlp_forward(user_ids, item_ids, u_tab, i_tab, w1, b1, w2, b2, *, block_b=128):
    """w1: (2*emb_dim, hidden), b1: (hidden,)/(1,hidden), w2: (hidden,1), b2: (1,1)."""
    B = int(user_ids.shape[0])
    n_users, emb = int(u_tab.shape[0]), int(u_tab.shape[1])
    n_items = int(i_tab.shape[0])
    hidden = int(w1.shape[1])
    assert w1.shape[0] == 2 * emb, "w1 must have 2*emb_dim input features"

    # Lane-dense batch tile: multiple of 128 so activations/stores are full-lane.
    tb = max(128, _round_up(block_b, 128))
    b_pad = _round_up(max(B, 1), tb)
    grid = b_pad // tb

    # Ids laid out (1, b_pad): batch on the lane axis. Item ids offset into the
    # combined table. Padded entries index row 0 / row n_users (valid, discarded).
    uid = jnp.pad(user_ids.astype(jnp.int32).reshape(-1), (0, b_pad - B)).reshape(1, b_pad)
    iid = (jnp.pad(item_ids.astype(jnp.int32).reshape(-1), (0, b_pad - B)) + n_users
           ).reshape(1, b_pad)

    # Block-diagonal combined table^T: (2E, n_users+n_items).
    n_tab = n_users + n_items
    tabT = jnp.zeros((2 * emb, n_tab), jnp.float32)
    tabT = tabT.at[:emb, :n_users].set(u_tab.astype(jnp.float32).T)
    tabT = tabT.at[emb:, n_users:].set(i_tab.astype(jnp.float32).T)

    w1T = jnp.asarray(w1, jnp.float32).T                       # (H, 2E)
    b1c = jnp.asarray(b1, jnp.float32).reshape(hidden, 1)      # (H, 1)
    w2c = jnp.asarray(w2, jnp.float32).reshape(hidden, 1)      # (H, 1)
    b2c = jnp.asarray(b2, jnp.float32).reshape(1, 1)           # (1, 1)

    def resident(shape):
        return pl.BlockSpec(shape, lambda g: (0,) * len(shape))

    # Advisory cost hint for XLA scheduling around the call.
    flops = 2 * b_pad * (n_tab * 2 * emb + 2 * emb * hidden + hidden)
    bytes_accessed = 4 * (3 * b_pad + tabT.size + w1T.size + 2 * hidden + 1)
    cost = pl.CostEstimate(flops=flops, transcendentals=b_pad,
                           bytes_accessed=bytes_accessed)

    out = pl.pallas_call(
        mlp_kernel,
        out_shape=jax.ShapeDtypeStruct((1, b_pad), jnp.float32),
        grid_spec=pltpu.PrefetchScalarGridSpec(
            num_scalar_prefetch=0,
            grid=(grid,),
            in_specs=[
                pl.BlockSpec((1, tb), lambda g: (0, g)),     # user ids (lane axis = batch)
                pl.BlockSpec((1, tb), lambda g: (0, g)),     # item ids (offset)
                resident((2 * emb, n_tab)),                  # combined table^T (VMEM resident)
                resident((hidden, 2 * emb)),                 # w1^T
                resident((hidden, 1)),                       # b1
                resident((hidden, 1)),                       # w2
                resident((1, 1)),                            # b2
            ],
            out_specs=pl.BlockSpec((1, tb), lambda g: (0, g)),
        ),
        compiler_params=pltpu.CompilerParams(
            dimension_semantics=("parallel",),               # batch tiles independent (2 TCs on v7x)
        ),
        cost_estimate=cost,
    )(uid, iid, tabT, w1T, b1c, w2c, b2c)

    return out[0, :B].reshape(B, 1)                          # (B, 1) ratings


if __name__ == "__main__":
    # Module hyperparameters (matches MLP(n_users, n_items, layers=[16, 8])).
    n_users, n_items = 32, 48
    layers = [16, 8]
    emb_dim = layers[0] // 2          # 8
    B = 200                           # batch of (user, item) pairs -> 2 grid tiles at TB=128

    key = jax.random.PRNGKey(0)
    k1, k2, k3, k4, k5, k6, k7, k8 = jax.random.split(key, 8)

    # Deterministic parameter init (synthetic, not a checkpoint load).
    u_tab = jax.random.normal(k1, (n_users, emb_dim), dtype=jnp.float32) * 0.1
    i_tab = jax.random.normal(k2, (n_items, emb_dim), dtype=jnp.float32) * 0.1
    w1 = jax.random.normal(k3, (layers[0], layers[1]), dtype=jnp.float32) * 0.1
    b1 = jax.random.normal(k4, (1, layers[1]), dtype=jnp.float32) * 0.1
    w2 = jax.random.normal(k5, (layers[1], 1), dtype=jnp.float32) * 0.1
    b2 = jax.random.normal(k6, (1, 1), dtype=jnp.float32) * 0.1

    user_ids = jax.random.randint(k7, (B,), 0, n_users, dtype=jnp.int32)
    item_ids = jax.random.randint(k8, (B,), 0, n_items, dtype=jnp.int32)

    # block_b=128 -> grid of 2 lane-dense batch tiles (exercises multi-tile path).
    rating = mlp_forward(user_ids, item_ids, u_tab, i_tab, w1, b1, w2, b2,
                         block_b=128)
    rating = jax.block_until_ready(rating)

    # Pure-JAX reference check.
    x_ref = jnp.concatenate([u_tab[user_ids], i_tab[item_ids]], axis=1)
    h_ref = jnp.maximum(x_ref @ w1 + b1, 0.0)
    r_ref = jax.nn.sigmoid(h_ref @ w2 + b2)
    assert rating.shape == (B, 1)
    assert jnp.allclose(rating, r_ref, atol=1e-5), "mismatch vs JAX reference"

    print("KERNEL_OK")
</pallas_src>

<mosaic_0001>
module attributes {stable_mosaic.version = 11 : i64} {
  func.func @mlp_kernel(%arg0: i32, %arg1: memref<1x128xi32, #tpu.memory_space<vmem>>, %arg2: memref<1x128xi32, #tpu.memory_space<vmem>>, %arg3: memref<16x80xf32, #tpu.memory_space<vmem>>, %arg4: memref<8x16xf32, #tpu.memory_space<vmem>>, %arg5: memref<8x1xf32, #tpu.memory_space<vmem>>, %arg6: memref<8x1xf32, #tpu.memory_space<vmem>>, %arg7: memref<1x1xf32, #tpu.memory_space<vmem>>, %arg8: memref<1x128xf32, #tpu.memory_space<vmem>>) attributes {dimension_semantics = [#tpu.dimension_semantics<parallel>], iteration_bounds = array<i64: 2>, scalar_prefetch = 0 : i64, scratch_operands = 0 : i64, tpu.core_type = #tpu.core_type<tc>, window_params = [{transform_indices = @transform_0, window_bounds = array<i64: 1, 128>}, {transform_indices = @transform_1, window_bounds = array<i64: 1, 128>}, {pipeline_mode = #tpu.pipeline_mode<synchronous>, transform_indices = @transform_2, window_bounds = array<i64: 16, 80>}, {pipeline_mode = #tpu.pipeline_mode<synchronous>, transform_indices = @transform_3, window_bounds = array<i64: 8, 16>}, {pipeline_mode = #tpu.pipeline_mode<synchronous>, transform_indices = @transform_4, window_bounds = array<i64: 8, 1>}, {pipeline_mode = #tpu.pipeline_mode<synchronous>, transform_indices = @transform_5, window_bounds = array<i64: 8, 1>}, {pipeline_mode = #tpu.pipeline_mode<synchronous>, transform_indices = @transform_6, window_bounds = array<i64: 1, 1>}, {transform_indices = @transform_7, window_bounds = array<i64: 1, 128>}]} {
    %c0 = arith.constant 0 : index
    %c0_0 = arith.constant 0 : index
    %0 = vector.load %arg1[%c0, %c0_0] : memref<1x128xi32, #tpu.memory_space<vmem>>, vector<1x128xi32>
    %c0_1 = arith.constant 0 : index
    %c0_2 = arith.constant 0 : index
    %1 = vector.load %arg2[%c0_1, %c0_2] : memref<1x128xi32, #tpu.memory_space<vmem>>, vector<1x128xi32>
    %2 = tpu.iota {dimensions = array<i32: 0>} : vector<80x128xi32>
    %3 = vector.broadcast %0 : vector<1x128xi32> to vector<80x128xi32>
    %4 = arith.cmpi eq, %2, %3 : vector<80x128xi32>
    %5 = vector.broadcast %1 : vector<1x128xi32> to vector<80x128xi32>
    %6 = arith.cmpi eq, %2, %5 : vector<80x128xi32>
    %7 = arith.ori %4, %6 : vector<80x128xi1>
    %8 = arith.extui %7 : vector<80x128xi1> to vector<80x128xi32>
    %9 = arith.sitofp %8 : vector<80x128xi32> to vector<80x128xf32>
    %c0_3 = arith.constant 0 : index
    %c0_4 = arith.constant 0 : index
    %10 = vector.load %arg3[%c0_3, %c0_4] : memref<16x80xf32, #tpu.memory_space<vmem>>, vector<16x80xf32>
    %cst = arith.constant dense<0.000000e+00> : vector<16x128xf32>
    %11 = tpu.matmul %10, %9, %cst {dimension_numbers = #tpu.dot_dimension_numbers<[1], [0], [0], [1], [0, 0, 1, 1], [], []>} : vector<16x80xf32>, vector<80x128xf32>, vector<16x128xf32> -> vector<16x128xf32>
    %c0_5 = arith.constant 0 : index
    %c0_6 = arith.constant 0 : index
    %12 = vector.load %arg4[%c0_5, %c0_6] : memref<8x16xf32, #tpu.memory_space<vmem>>, vector<8x16xf32>
    %cst_7 = arith.constant dense<0.000000e+00> : vector<8x128xf32>
    %13 = tpu.matmul %12, %11, %cst_7 {dimension_numbers = #tpu.dot_dimension_numbers<[1], [0], [0], [1], [0, 0, 1, 1], [], []>} : vector<8x16xf32>, vector<16x128xf32>, vector<8x128xf32> -> vector<8x128xf32>
    %c0_8 = arith.constant 0 : index
    %c0_9 = arith.constant 0 : index
    %14 = vector.load %arg5[%c0_8, %c0_9] : memref<8x1xf32, #tpu.memory_space<vmem>>, vector<8x1xf32>
    %15 = vector.broadcast %14 : vector<8x1xf32> to vector<8x128xf32>
    %16 = arith.addf %13, %15 : vector<8x128xf32>
    %cst_10 = arith.constant 0.000000e+00 : f32
    %17 = vector.broadcast %cst_10 : f32 to vector<8x128xf32>
    %18 = arith.maximumf %16, %17 : vector<8x128xf32>
    %c0_11 = arith.constant 0 : index
    %c0_12 = arith.constant 0 : index
    %19 = vector.load %arg6[%c0_11, %c0_12] : memref<8x1xf32, #tpu.memory_space<vmem>>, vector<8x1xf32>
    %20 = vector.broadcast %19 : vector<8x1xf32> to vector<8x128xf32>
    %21 = arith.mulf %18, %20 : vector<8x128xf32>
    %cst_13 = arith.constant dense<0.000000e+00> : vector<128xf32>
    %22 = vector.multi_reduction <add>, %21, %cst_13 [0] : vector<8x128xf32> to vector<128xf32>
    %23 = vector.shape_cast %22 : vector<128xf32> to vector<1x128xf32>
    %c0_14 = arith.constant 0 : index
    %c0_15 = arith.constant 0 : index
    %24 = vector.load %arg7[%c0_14, %c0_15] : memref<1x1xf32, #tpu.memory_space<vmem>>, vector<1x1xf32>
    %25 = vector.broadcast %24 : vector<1x1xf32> to vector<1x128xf32>
    %26 = arith.addf %23, %25 : vector<1x128xf32>
    %27 = arith.negf %26 : vector<1x128xf32>
    %28 = math.exp %27 : vector<1x128xf32>
    %cst_16 = arith.constant 1.000000e+00 : f32
    %29 = vector.broadcast %cst_16 : f32 to vector<1x128xf32>
    %30 = arith.addf %29, %28 : vector<1x128xf32>
    %31 = arith.divf %29, %30 : vector<1x128xf32>
    %c0_17 = arith.constant 0 : index
    %c0_18 = arith.constant 0 : index
    %32 = vector.load %arg8[%c0_17, %c0_18] : memref<1x128xf32, #tpu.memory_space<vmem>>, vector<1x128xf32>
    tpu.vector_store %arg8[%c0_17, %c0_18], %31 {strides = array<i32>} : memref<1x128xf32, #tpu.memory_space<vmem>>, vector<1x128xf32>,
    return
  }
  func.func @transform_0(%arg0: i32) -> (i32, i32) {
    %c0_i32 = arith.constant 0 : i32
    %c0_i32_0 = arith.constant 0 : i32
    return %c0_i32, %arg0 : i32, i32
  }
  func.func @transform_1(%arg0: i32) -> (i32, i32) {
    %c0_i32 = arith.constant 0 : i32
    %c0_i32_0 = arith.constant 0 : i32
    return %c0_i32, %arg0 : i32, i32
  }
  func.func @transform_2(%arg0: i32) -> (i32, i32) {
    %c0_i32 = arith.constant 0 : i32
    %c0_i32_0 = arith.constant 0 : i32
    %c0_i32_1 = arith.constant 0 : i32
    return %c0_i32, %c0_i32_0 : i32, i32
  }
  func.func @transform_3(%arg0: i32) -> (i32, i32) {
    %c0_i32 = arith.constant 0 : i32
    %c0_i32_0 = arith.constant 0 : i32
    %c0_i32_1 = arith.constant 0 : i32
    return %c0_i32, %c0_i32_0 : i32, i32
  }
  func.func @transform_4(%arg0: i32) -> (i32, i32) {
    %c0_i32 = arith.constant 0 : i32
    %c0_i32_0 = arith.constant 0 : i32
    %c0_i32_1 = arith.constant 0 : i32
    return %c0_i32, %c0_i32_0 : i32, i32
  }
  func.func @transform_5(%arg0: i32) -> (i32, i32) {
    %c0_i32 = arith.constant 0 : i32
    %c0_i32_0 = arith.constant 0 : i32
    %c0_i32_1 = arith.constant 0 : i32
    return %c0_i32, %c0_i32_0 : i32, i32
  }
  func.func @transform_6(%arg0: i32) -> (i32, i32) {
    %c0_i32 = arith.constant 0 : i32
    %c0_i32_0 = arith.constant 0 : i32
    %c0_i32_1 = arith.constant 0 : i32
    return %c0_i32, %c0_i32_0 : i32, i32
  }
  func.func @transform_7(%arg0: i32) -> (i32, i32) {
    %c0_i32 = arith.constant 0 : i32
    %c0_i32_0 = arith.constant 0 : i32
    return %c0_i32, %arg0 : i32, i32
  }
}

</mosaic_0001>

<llo_original>
// kernel: tpu_custom_call.1
$region0: #{tpu_custom_call.1}
  #allocation0 [shape = 'u32[]', space=smem, size = 0x4, offset = 0x4, fixed_abs, tag = 'smem constant byte address 0x4 - core index']
  #allocation1 [shape = 'u32[144,128]{1,0:T(1,128)}', space=vmem, size = 0x12000, scoped, tag = 'internal scratch']
  #allocation2 [shape = 'f32[1,1]{1,0:T(1,128)S(1)}', space=vmem, size = 0x200, scoped, tag = 'scoped memory for tpu_custom_call.1']
  %s0 = inlined_call_operand.vmem [shape: s32[1,256], index: 0, kind: input, shape index: {}]
  %s1 = inlined_call_operand.vmem [shape: s32[1,256], index: 1, kind: input, shape index: {}]
  %s2 = inlined_call_operand.vmem [shape: f32[16,80], index: 2, kind: input, shape index: {}]
  %s3 = inlined_call_operand.vmem [shape: f32[8,16], index: 3, kind: input, shape index: {}]
  %s4 = inlined_call_operand.vmem [shape: f32[8,1], index: 4, kind: input, shape index: {}]
  %s5 = inlined_call_operand.vmem [shape: f32[8,1], index: 5, kind: input, shape index: {}]
  %s6 = inlined_call_operand.<no memory space> [shape: f32[1,1], index: 6, kind: input, shape index: {}]
  %s7 = inlined_call_operand.hbm [shape: f32[1,256], index: 7, kind: output, shape index: {}]
  %s8 = sld [smem:[#allocation0]]
  $region61: #{tpu_custom_call.1} parent=0
    _
  %s10 = ssub.s32 1, %s8
  %s11 = scalar_select 0, %s10, %s8
  %v12 = vstv %s6
  %13 = vst [vmem:[#allocation2] sm:$0x1] %v12
  $region1: #{tpu_custom_call.1} parent=0
    #allocation3 [shape = 'u8[1024]{0}', space=vmem, size = 0x400, scoped, tag = 'output window, operand 0']
    #allocation4 [shape = 's32[2]{0}', space=sflag, size = 0x8, scoped, tag = 'scoped memory for tpu_custom_call.1']
    %14 = vsyncpa [#allocation4], 0
    %s15 = scalar_lea.sflag [#allocation4], 1
    %16 = vsyncpa %s15, 0
    loop: start=0, step=1, limit=4
    $region2: #{tpu_custom_call.1} parent=1 // loop_pre_header
      _
    $region3: #{tpu_custom_call.1} parent=1 // loop_header
      %s18 = sphi 0, %s22
      %p19 = scmp.ge.s32.totalorder %s18, 4
      %s28 = sphi 0, %s30
      %s31 = sphi 0, %s28
      %s32 = sphi 0, %s31
      %s48 = sphi 0, %s32
      %s54 = sphi 0, %s56
      %s57 = sphi 0, %s54
      %s58 = sphi 0, %s57
      %s74 = sphi 0, %s58
      %s78 = sphi 0, %s78
      %s80 = sphi 0, %s78
      %s81 = sphi 0, %s80
      %s95 = sphi 0, %s81
      %s99 = sphi 0, %s99
      %s101 = sphi 0, %s99
      %s102 = sphi 0, %s101
      %s116 = sphi 0, %s102
      %s120 = sphi 0, %s120
      %s122 = sphi 0, %s120
      %s123 = sphi 0, %s122
      %s137 = sphi 0, %s123
      %s141 = sphi 0, %s141
      %s143 = sphi 0, %s141
      %s144 = sphi 0, %s143
      %s158 = sphi 0, %s144
      %s162 = sphi 0, %s162
      %s164 = sphi 0, %s162
      %s165 = sphi 0, %s164
      %s179 = sphi 0, %s165
      %s185 = sphi 0, %s187
      %s188 = sphi 0, %s185
      %s189 = sphi 0, %s188
      %s205 = sphi 0, %s189
    $region4: #{tpu_custom_call.1} parent=1 // loop_header_branch
      %21 = sbr.rel (%p19) target = $region8
    $region5: #{tpu_custom_call.1} parent=1 // loop_body
      %s23 = ssub.s32 %s18, 1
      %s24 = ssub.s32 %s18, 2
      %s25 = sadd.s32 %s18, 1
      %s26 = ssub.s32 %s18, %s25
      %p27 = scmp.eq.s32.totalorder %s26, 0
      %s29 = sadd.s32 %s28, 1
      %s30 = scalar_select %p27, %s28, %s29
      %p33 = pneg %p27
      %p34 = scmp.eq.s32.totalorder %s18, 1
      %p35 = por %p33, %p34
      %p36 = scmp.ne.s32.totalorder %s28, %s31
      %p37 = scmp.eq.s32.totalorder %s18, 0
      %p38 = por %p36, %p37
      %p39 = scmp.ne.s32.totalorder %s28, %s31
      %p40 = scmp.eq.s32.totalorder %s23, 1
      %p41 = por %p39, %p40
      %p42 = scmp.ne.s32.totalorder %s31, %s32
      %p43 = scmp.eq.s32.totalorder %s23, 0
      %p44 = por %p42, %p43
      %p45 = scmp.ne.s32.totalorder %s31, %s32
      %p46 = scmp.eq.s32.totalorder %s24, 1
      %p47 = por %p45, %p46
      %p49 = scmp.ne.s32.totalorder %s32, %s48
      %p50 = scmp.eq.s32.totalorder %s24, 0
      %p51 = por %p49, %p50
      %s52 = ssub.s32 %s18, %s25
      %p53 = scmp.eq.s32.totalorder %s52, 0
      %s55 = sadd.s32 %s54, 1
      %s56 = scalar_select %p53, %s54, %s55
      %p59 = pneg %p53
      %p60 = scmp.eq.s32.totalorder %s18, 1
      %p61 = por %p59, %p60
      %p62 = scmp.ne.s32.totalorder %s54, %s57
      %p63 = scmp.eq.s32.totalorder %s18, 0
      %p64 = por %p62, %p63
      %p65 = scmp.ne.s32.totalorder %s54, %s57
      %p66 = scmp.eq.s32.totalorder %s23, 1
      %p67 = por %p65, %p66
      %p68 = scmp.ne.s32.totalorder %s57, %s58
      %p69 = scmp.eq.s32.totalorder %s23, 0
      %p70 = por %p68, %p69
      %p71 = scmp.ne.s32.totalorder %s57, %s58
      %p72 = scmp.eq.s32.totalorder %s24, 1
      %p73 = por %p71, %p72
      %p75 = scmp.ne.s32.totalorder %s58, %s74
      %p76 = scmp.eq.s32.totalorder %s24, 0
      %p77 = por %p75, %p76
      %s79 = sadd.s32 %s78, 1
      %p82 = scmp.eq.s32.totalorder %s18, 1
      %p83 = scmp.ne.s32.totalorder %s78, %s80
      %p84 = scmp.eq.s32.totalorder %s18, 0
      %p85 = por %p83, %p84
      %p86 = scmp.ne.s32.totalorder %s78, %s80
      %p87 = scmp.eq.s32.totalorder %s23, 1
      %p88 = por %p86, %p87
      %p89 = scmp.ne.s32.totalorder %s80, %s81
      %p90 = scmp.eq.s32.totalorder %s23, 0
      %p91 = por %p89, %p90
      %p92 = scmp.ne.s32.totalorder %s80, %s81
      %p93 = scmp.eq.s32.totalorder %s24, 1
      %p94 = por %p92, %p93
      %p96 = scmp.ne.s32.totalorder %s81, %s95
      %p97 = scmp.eq.s32.totalorder %s24, 0
      %p98 = por %p96, %p97
      %s100 = sadd.s32 %s99, 1
      %p103 = scmp.eq.s32.totalorder %s18, 1
      %p104 = scmp.ne.s32.totalorder %s99, %s101
      %p105 = scmp.eq.s32.totalorder %s18, 0
      %p106 = por %p104, %p105
      %p107 = scmp.ne.s32.totalorder %s99, %s101
      %p108 = scmp.eq.s32.totalorder %s23, 1
      %p109 = por %p107, %p108
      %p110 = scmp.ne.s32.totalorder %s101, %s102
      %p111 = scmp.eq.s32.totalorder %s23, 0
      %p112 = por %p110, %p111
      %p113 = scmp.ne.s32.totalorder %s101, %s102
      %p114 = scmp.eq.s32.totalorder %s24, 1
      %p115 = por %p113, %p114
      %p117 = scmp.ne.s32.totalorder %s102, %s116
      %p118 = scmp.eq.s32.totalorder %s24, 0
      %p119 = por %p117, %p118
      %s121 = sadd.s32 %s120, 1
      %p124 = scmp.eq.s32.totalorder %s18, 1
      %p125 = scmp.ne.s32.totalorder %s120, %s122
      %p126 = scmp.eq.s32.totalorder %s18, 0
      %p127 = por %p125, %p126
      %p128 = scmp.ne.s32.totalorder %s120, %s122
      %p129 = scmp.eq.s32.totalorder %s23, 1
      %p130 = por %p128, %p129
      %p131 = scmp.ne.s32.totalorder %s122, %s123
      %p132 = scmp.eq.s32.totalorder %s23, 0
      %p133 = por %p131, %p132
      %p134 = scmp.ne.s32.totalorder %s122, %s123
      %p135 = scmp.eq.s32.totalorder %s24, 1
      %p136 = por %p134, %p135
      %p138 = scmp.ne.s32.totalorder %s123, %s137
      %p139 = scmp.eq.s32.totalorder %s24, 0
      %p140 = por %p138, %p139
      %s142 = sadd.s32 %s141, 1
      %p145 = scmp.eq.s32.totalorder %s18, 1
      %p146 = scmp.ne.s32.totalorder %s141, %s143
      %p147 = scmp.eq.s32.totalorder %s18, 0
      %p148 = por %p146, %p147
      %p149 = scmp.ne.s32.totalorder %s141, %s143
      %p150 = scmp.eq.s32.totalorder %s23, 1
      %p151 = por %p149, %p150
      %p152 = scmp.ne.s32.totalorder %s143, %s144
      %p153 = scmp.eq.s32.totalorder %s23, 0
      %p154 = por %p152, %p153
      %p155 = scmp.ne.s32.totalorder %s143, %s144
      %p156 = scmp.eq.s32.totalorder %s24, 1
      %p157 = por %p155, %p156
      %p159 = scmp.ne.s32.totalorder %s144, %s158
      %p160 = scmp.eq.s32.totalorder %s24, 0
      %p161 = por %p159, %p160
      %s163 = sadd.s32 %s162, 1
      %p166 = scmp.eq.s32.totalorder %s18, 1
      %p167 = scmp.ne.s32.totalorder %s162, %s164
      %p168 = scmp.eq.s32.totalorder %s18, 0
      %p169 = por %p167, %p168
      %p170 = scmp.ne.s32.totalorder %s162, %s164
      %p171 = scmp.eq.s32.totalorder %s23, 1
      %p172 = por %p170, %p171
      %p173 = scmp.ne.s32.totalorder %s164, %s165
      %p174 = scmp.eq.s32.totalorder %s23, 0
      %p175 = por %p173, %p174
      %p176 = scmp.ne.s32.totalorder %s164, %s165
      %p177 = scmp.eq.s32.totalorder %s24, 1
      %p178 = por %p176, %p177
      %p180 = scmp.ne.s32.totalorder %s165, %s179
      %p181 = scmp.eq.s32.totalorder %s24, 0
      %p182 = por %p180, %p181
      %s183 = ssub.s32 %s18, %s25
      %p184 = scmp.eq.s32.totalorder %s183, 0
      %s186 = sadd.s32 %s185, 1
      %s187 = scalar_select %p184, %s185, %s186
      %p190 = pneg %p184
      %p191 = scmp.eq.s32.totalorder %s18, 1
      %p192 = por %p190, %p191
      %p193 = scmp.ne.s32.totalorder %s185, %s188
      %p194 = scmp.eq.s32.totalorder %s18, 0
      %p195 = por %p193, %p194
      %p196 = scmp.ne.s32.totalorder %s185, %s188
      %p197 = scmp.eq.s32.totalorder %s23, 1
      %p198 = por %p196, %p197
      %p199 = scmp.ne.s32.totalorder %s188, %s189
      %p200 = scmp.eq.s32.totalorder %s23, 0
      %p201 = por %p199, %p200
      %p202 = scmp.ne.s32.totalorder %s188, %s189
      %p203 = scmp.eq.s32.totalorder %s24, 1
      %p204 = por %p202, %p203
      %p206 = scmp.ne.s32.totalorder %s189, %s205
      %p207 = scmp.eq.s32.totalorder %s24, 0
      %p208 = por %p206, %p207
      %p209 = scmp.le.s32.totalorder 1, %s18
      %p210 = scmp.lt.s32.totalorder %s18, 3
      %p211 = pnand %p209, %p210
      %p212 = pneg %p211
      // Predicated region
      $region9: #{tpu_custom_call.1} parent=5 // pred_check
        _
      $region10: #{tpu_custom_call.1} parent=5 // pred_check_branch
        %214 = sbr.rel (%p211) target = $region12
      $region11: #{tpu_custom_call.1} parent=5 // pred_region
        %s215 = ssub.s32 %s18, 1
        // Predicated region
        $region13: #{tpu_custom_call.1} parent=11 // pred_check
          %p216 = pneg %p91
        $region14: #{tpu_custom_call.1} parent=11 // pred_check_branch
          %218 = sbr.rel (%p216) target = $region16
        $region15: #{tpu_custom_call.1} parent=11 // pred_region
          _
        $region16: #{tpu_custom_call.1} parent=11 // pred_fallthru
          _
        // Predicated region
        $region17: #{tpu_custom_call.1} parent=11 // pred_check
          %p219 = pneg %p112
        $region18: #{tpu_custom_call.1} parent=11 // pred_check_branch
          %221 = sbr.rel (%p219) target = $region20
        $region19: #{tpu_custom_call.1} parent=11 // pred_region
          _
        $region20: #{tpu_custom_call.1} parent=11 // pred_fallthru
          _
        // Predicated region
        $region21: #{tpu_custom_call.1} parent=11 // pred_check
          %p222 = pneg %p133
        $region22: #{tpu_custom_call.1} parent=11 // pred_check_branch
          %224 = sbr.rel (%p222) target = $region24
        $region23: #{tpu_custom_call.1} parent=11 // pred_region
          _
        $region24: #{tpu_custom_call.1} parent=11 // pred_fallthru
          _
        // Predicated region
        $region25: #{tpu_custom_call.1} parent=11 // pred_check
          %p225 = pneg %p154
        $region26: #{tpu_custom_call.1} parent=11 // pred_check_branch
          %227 = sbr.rel (%p225) target = $region28
        $region27: #{tpu_custom_call.1} parent=11 // pred_region
          _
        $region28: #{tpu_custom_call.1} parent=11 // pred_fallthru
          _
        // Predicated region
        $region29: #{tpu_custom_call.1} parent=11 // pred_check
          %p228 = pneg %p175
        $region30: #{tpu_custom_call.1} parent=11 // pred_check_branch
          %230 = sbr.rel (%p228) target = $region32
        $region31: #{tpu_custom_call.1} parent=11 // pred_region
          _
        $region32: #{tpu_custom_call.1} parent=11 // pred_fallthru
          _
      $region12: #{tpu_custom_call.1} parent=5 // pred_fallthru
        _
      %p231 = scmp.lt.s32.totalorder %s18, 2
      // Predicated region
      $region33: #{tpu_custom_call.1} parent=5 // pred_check
        %p232 = pneg %p231
      $region34: #{tpu_custom_call.1} parent=5 // pred_check_branch
        %234 = sbr.rel (%p232) target = $region36
      $region35: #{tpu_custom_call.1} parent=5 // pred_region
        // Predicated region
        $region37: #{tpu_custom_call.1} parent=35 // pred_check
          %p235 = pneg %p38
        $region38: #{tpu_custom_call.1} parent=35 // pred_check_branch
          %237 = sbr.rel (%p235) target = $region40
        $region39: #{tpu_custom_call.1} parent=35 // pred_region
          %p238 = scmp.lt.s32.totalorder %s18, 1
          %s239 = scalar_select %p238, %s18, 1
          %s240 = scalar_lea.vmem %s0, %s239
        $region40: #{tpu_custom_call.1} parent=35 // pred_fallthru
          _
        // Predicated region
        $region41: #{tpu_custom_call.1} parent=35 // pred_check
          %p241 = pneg %p64
        $region42: #{tpu_custom_call.1} parent=35 // pred_check_branch
          %243 = sbr.rel (%p241) target = $region44
        $region43: #{tpu_custom_call.1} parent=35 // pred_region
          %p244 = scmp.lt.s32.totalorder %s18, 1
          %s245 = scalar_select %p244, %s18, 1
          %s246 = scalar_lea.vmem %s1, %s245
        $region44: #{tpu_custom_call.1} parent=35 // pred_fallthru
          _
      $region36: #{tpu_custom_call.1} parent=5 // pred_fallthru
        _
      %p247 = scmp.le.s32.totalorder 1, %s18
      %p248 = scmp.lt.s32.totalorder %s18, 3
      %p249 = pnand %p247, %p248
      %p250 = pneg %p249
      // Predicated region
      $region45: #{tpu_custom_call.1} parent=5 // pred_check
        _
      $region46: #{tpu_custom_call.1} parent=5 // pred_check_branch
        %252 = sbr.rel (%p249) target = $region48
      $region47: #{tpu_custom_call.1} parent=5 // pred_region
        %s253 = ssub.s32 %s18, 1
        %p254 = scmp.lt.s32.totalorder %s23, 1
        %s255 = scalar_select %p254, %s23, 1
        %s256 = scalar_lea.vmem %s0, %s255
        %p257 = pneg %p44
        %p258 = pneg %p41
        %p259 = scmp.lt.s32.totalorder %s23, 1
        %s260 = scalar_select %p259, %s23, 1
        %s261 = scalar_lea.vmem %s1, %s260
        %p262 = pneg %p70
        %p263 = pneg %p67
        %p264 = pneg %p91
        %p265 = pneg %p88
        %p266 = pneg %p112
        %p267 = pneg %p109
        %p268 = pneg %p133
        %p269 = pneg %p130
        %p270 = pneg %p154
        %p271 = pneg %p151
        %p272 = pneg %p175
        %p273 = pneg %p172
        %p274 = pneg %p201
        %p275 = pneg %p198
        %s276 = sand.u32 %s188, 1
        %s277 = scalar_lea.sflag [#allocation4], %s276
        %s278 = sand.u32 %s188, 1
        %s279 = scalar_lea.vmem [#allocation3], %s278
        %p280 = scmp.lt.s32.totalorder %s23, 1
        %s281 = scalar_select %p280, %s23, 1
        %s282 = scalar_lea.vmem %s0, %s281
        %p283 = scmp.lt.s32.totalorder %s23, 1
        %s284 = scalar_select %p283, %s23, 1
        %s285 = scalar_lea.vmem %s1, %s284
        %v286 = vld [vmem:[%s282] sm:$0x1]
        %v287 = vld [vmem:[%s285] sm:$0x1]
        %v288 = vlaneseq
        %v289 = vshrl.u32 %v288, 7
        %v290 = vadd.s32 %v289, 8
        %v291 = vadd.s32 %v289, 16
        %v292 = vadd.s32 %v289, 24
        %v293 = vadd.s32 %v289, 32
        %v294 = vadd.s32 %v289, 40
        %v295 = vadd.s32 %v289, 48
        %v296 = vadd.s32 %v289, 56
        %v297 = vadd.s32 %v289, 64
        %v298 = vadd.s32 %v289, 72
        %v299 = vlaneseq
        %v300 = vshrl.u32 %v299, 7
        %v301 = vsub.s32 0, %v300
        %v302 = vrot.slane %v286, %v301
        %vm303 = vcmp.eq.s32.totalorder %v289, %v302
        %vm304 = vcmp.eq.s32.totalorder %v290, %v302
        %vm305 = vcmp.eq.s32.totalorder %v291, %v302
        %vm306 = vcmp.eq.s32.totalorder %v292, %v302
        %vm307 = vcmp.eq.s32.totalorder %v293, %v302
        %vm308 = vcmp.eq.s32.totalorder %v294, %v302
        %vm309 = vcmp.eq.s32.totalorder %v295, %v302
        %vm310 = vcmp.eq.s32.totalorder %v296, %v302
        %vm311 = vcmp.eq.s32.totalorder %v297, %v302
        %vm312 = vcmp.eq.s32.totalorder %v298, %v302
        %v313 = vlaneseq
        %v314 = vshrl.u32 %v313, 7
        %v315 = vsub.s32 0, %v314
        %v316 = vrot.slane %v287, %v315
        %vm317 = vcmp.eq.s32.totalorder %v289, %v316
        %vm318 = vcmp.eq.s32.totalorder %v290, %v316
        %vm319 = vcmp.eq.s32.totalorder %v291, %v316
        %vm320 = vcmp.eq.s32.totalorder %v292, %v316
        %vm321 = vcmp.eq.s32.totalorder %v293, %v316
        %vm322 = vcmp.eq.s32.totalorder %v294, %v316
        %vm323 = vcmp.eq.s32.totalorder %v295, %v316
        %vm324 = vcmp.eq.s32.totalorder %v296, %v316
        %vm325 = vcmp.eq.s32.totalorder %v297, %v316
        %vm326 = vcmp.eq.s32.totalorder %v298, %v316
        %vm327 = vmor %vm303, %vm317
        %vm328 = vmor %vm304, %vm318
        %vm329 = vmor %vm305, %vm319
        %vm330 = vmor %vm306, %vm320
        %vm331 = vmor %vm307, %vm321
        %vm332 = vmor %vm308, %vm322
        %vm333 = vmor %vm309, %vm323
        %vm334 = vmor %vm310, %vm324
        %vm335 = vmor %vm311, %vm325
        %vm336 = vmor %vm312, %vm326
        %v337 = vsel %vm327, 1, 0
        %v338 = vsel %vm328, 1, 0
        %v339 = vsel %vm329, 1, 0
        %v340 = vsel %vm330, 1, 0
        %v341 = vsel %vm331, 1, 0
        %v342 = vsel %vm332, 1, 0
        %v343 = vsel %vm333, 1, 0
        %v344 = vsel %vm334, 1, 0
        %v345 = vsel %vm335, 1, 0
        %v346 = vsel %vm336, 1, 0
        %v347 = vcvt.s32.f32 %v337
        %v348 = vcvt.s32.f32 %v338
        %v349 = vcvt.s32.f32 %v339
        %v350 = vcvt.s32.f32 %v340
        %v351 = vcvt.s32.f32 %v341
        %v352 = vcvt.s32.f32 %v342
        %v353 = vcvt.s32.f32 %v343
        %v354 = vcvt.s32.f32 %v344
        %v355 = vcvt.s32.f32 %v345
        %v356 = vcvt.s32.f32 %v346
        %v357 = vld [vmem:[%s2] sm:$0xff]
        %v358 = vld [vmem:[%s2 + $0x8] sm:$0xff]
        %vm359 = vcmask 654336
        %v361 = vsel %vm359, %v357, 0
        %v364 = vsel %vm359, %v358, 0
        %366 = vmatprep.subr.mxu0 0.0
        %367 = vmatpush1.msra.mxu0 %v347
        %368 = vmatprep.subr.mxu0 0.0
        %369 = vmatpush1.msra.mxu0 %v348
        %370 = vmatprep.subr.mxu0 0.0
        %371 = vmatpush1.msra.mxu0 %v349
        %372 = vmatprep.subr.mxu0 0.0
        %373 = vmatpush1.msra.mxu0 %v350
        %374 = vmatprep.subr.mxu0 0.0
        %375 = vmatpush1.msra.mxu0 %v351
        %376 = vmatprep.subr.mxu0 0.0
        %377 = vmatpush1.msra.mxu0 %v352
        %378 = vmatprep.subr.mxu0 0.0
        %379 = vmatpush1.msra.mxu0 %v353
        %380 = vmatprep.subr.mxu0 0.0
        %381 = vmatpush1.msra.mxu0 %v354
        %382 = vmatprep.subr.mxu0 0.0
        %383 = vmatpush1.msra.mxu0 %v355
        %384 = vmatprep.subr.mxu0 0.0
        %385 = vmatpush1.msra.mxu0 %v356
        %386 = vmatprep.subr.mxu0 0.0
        %387 = vmatpush1.msra.mxu0 0.0
        %388 = vmatprep.subr.mxu0 0.0
        %389 = vmatpush1.msra.mxu0 0.0
        %390 = vmatprep.subr.mxu0 0.0
        %391 = vmatpush1.msra.mxu0 0.0
        %392 = vmatprep.subr.mxu0 0.0
        %393 = vmatpush1.msra.mxu0 0.0
        %394 = vmatprep.subr.mxu0 0.0
        %395 = vmatpush1.msra.mxu0 0.0
        %396 = vmatprep.subr.mxu0 0.0
        %397 = vmatpush1.msra.mxu0 0.0
        %398 = vmatprep.subr.mxu0 0.0
        %399 = vmatpush1.msra.mxu0 0.0
        %400 = vmatprep.subr.mxu0 0.0
        %401 = vmatpush1.msra.mxu0 0.0
        %402 = vmatprep.subr.mxu0 0.0
        %403 = vmatpush1.msra.mxu0 0.0
        %404 = vmatprep.subr.mxu0 0.0
        %405 = vmatpush1.msra.mxu0 0.0
        %406 = vmatprep.subr.mxu0 0.0
        %407 = vmatpush1.msra.mxu0 0.0
        %408 = vmatprep.subr.mxu0 0.0
        %409 = vmatpush1.msra.mxu0 0.0
        %410 = vmatprep.subr.mxu0 0.0
        %411 = vmatpush1.msra.mxu0 0.0
        %412 = vmatprep.subr.mxu0 0.0
        %413 = vmatpush1.msra.mxu0 0.0
        %414 = vmatprep.subr.mxu0 0.0
        %415 = vmatpush1.msra.mxu0 0.0
        %416 = vmatprep.subr.mxu0 0.0
        %417 = vmatpush1.msra.mxu0 0.0
        %418 = vmatprep.subr.mxu0 0.0
        %419 = vmatpush1.msra.mxu0 0.0
        %420 = vmatprep.subr.mxu0 0.0
        %421 = vmatpush1.msra.mxu0 0.0
        %422 = vmatprep.subr.mxu0 0.0
        %423 = vmatpush1.msra.mxu0 0.0
        %424 = vmatprep.subr.mxu0 0.0
        %425 = vmatpush1.msra.mxu0 0.0
        %426 = vmatprep.subr.mxu0 0.0
        %427 = vmatpush1.msra.mxu0 0.0
        %428 = vmatprep.subr.mxu0 0.0
        %429 = vmatpush1.msra.mxu0 0.0
        %430 = vmatprep.mubr.f32.mxu0 0.0
        %431 = vmatmul.mubr.f32.gmra.mrb[0].mxu0 %v361
        %v432 = vpop.f32.mrb[0].mxu0
        %v433 = vadd.f32 0.0, %v432
        %v434 = vpop.f32.mrb[0].mxu0
        %435 = vmatprep.mubr.f32.mxu0 0.0
        %436 = vmatmul.mubr.f32.gmra.mrb[0].mxu0 %v364
        %v437 = vpop.f32.mrb[0].mxu0
        %v438 = vadd.f32 0.0, %v437
        %v439 = vpop.f32.mrb[0].mxu0
        %440 = vdwg.mxu0
        %v441 = vld [vmem:[%s3] sm:$0xff]
        %v442 = vld [vmem:[%s4] sm:$0xff]
        %444 = vset.pattern.permute.xlu0 0
        %445 = vperm.xlu0 %444, %v442
        %v446 = vpop.permute.xlu0 %445
        %vm448 = vcmask 130048
        %v450 = vsel %vm448, %v441, 0
        %452 = vmatprep.subr.mxu0 0.0
        %453 = vmatpush1.msra.mxu0 %v433
        %454 = vmatprep.subr.mxu0 0.0
        %455 = vmatpush1.msra.mxu0 %v438
        %456 = vmatprep.subr.mxu0 0.0
        %457 = vmatpush1.msra.mxu0 0.0
        %458 = vmatprep.subr.mxu0 0.0
        %459 = vmatpush1.msra.mxu0 0.0
        %460 = vmatprep.subr.mxu0 0.0
        %461 = vmatpush1.msra.mxu0 0.0
        %462 = vmatprep.subr.mxu0 0.0
        %463 = vmatpush1.msra.mxu0 0.0
        %464 = vmatprep.subr.mxu0 0.0
        %465 = vmatpush1.msra.mxu0 0.0
        %466 = vmatprep.subr.mxu0 0.0
        %467 = vmatpush1.msra.mxu0 0.0
        %468 = vmatprep.subr.mxu0 0.0
        %469 = vmatpush1.msra.mxu0 0.0
        %470 = vmatprep.subr.mxu0 0.0
        %471 = vmatpush1.msra.mxu0 0.0
        %472 = vmatprep.subr.mxu0 0.0
        %473 = vmatpush1.msra.mxu0 0.0
        %474 = vmatprep.subr.mxu0 0.0
        %475 = vmatpush1.msra.mxu0 0.0
        %476 = vmatprep.subr.mxu0 0.0
        %477 = vmatpush1.msra.mxu0 0.0
        %478 = vmatprep.subr.mxu0 0.0
        %479 = vmatpush1.msra.mxu0 0.0
        %480 = vmatprep.subr.mxu0 0.0
        %481 = vmatpush1.msra.mxu0 0.0
        %482 = vmatprep.subr.mxu0 0.0
        %483 = vmatpush1.msra.mxu0 0.0
        %484 = vmatprep.subr.mxu0 0.0
        %485 = vmatpush1.msra.mxu0 0.0
        %486 = vmatprep.subr.mxu0 0.0
        %487 = vmatpush1.msra.mxu0 0.0
        %488 = vmatprep.subr.mxu0 0.0
        %489 = vmatpush1.msra.mxu0 0.0
        %490 = vmatprep.subr.mxu0 0.0
        %491 = vmatpush1.msra.mxu0 0.0
        %492 = vmatprep.subr.mxu0 0.0
        %493 = vmatpush1.msra.mxu0 0.0
        %494 = vmatprep.subr.mxu0 0.0
        %495 = vmatpush1.msra.mxu0 0.0
        %496 = vmatprep.subr.mxu0 0.0
        %497 = vmatpush1.msra.mxu0 0.0
        %498 = vmatprep.subr.mxu0 0.0
        %499 = vmatpush1.msra.mxu0 0.0
        %500 = vmatprep.subr.mxu0 0.0
        %501 = vmatpush1.msra.mxu0 0.0
        %502 = vmatprep.subr.mxu0 0.0
        %503 = vmatpush1.msra.mxu0 0.0
        %504 = vmatprep.subr.mxu0 0.0
        %505 = vmatpush1.msra.mxu0 0.0
        %506 = vmatprep.subr.mxu0 0.0
        %507 = vmatpush1.msra.mxu0 0.0
        %508 = vmatprep.subr.mxu0 0.0
        %509 = vmatpush1.msra.mxu0 0.0
        %510 = vmatprep.subr.mxu0 0.0
        %511 = vmatpush1.msra.mxu0 0.0
        %512 = vmatprep.subr.mxu0 0.0
        %513 = vmatpush1.msra.mxu0 0.0
        %514 = vmatprep.subr.mxu0 0.0
        %515 = vmatpush1.msra.mxu0 0.0
        %516 = vmatprep.mubr.f32.mxu0 0.0
        %517 = vmatmul.mubr.f32.gmra.mrb[0].mxu0 %v450
        %v518 = vpop.f32.mrb[0].mxu0
        %v519 = vadd.f32 %v446, %v518
        %v520 = vpop.f32.mrb[0].mxu0
        %521 = vdwg.mxu0
        %v522 = vmax.f32 %v519, 0.0
        %v523 = vld [vmem:[%s5] sm:$0xff]
        %525 = vset.pattern.permute.xlu0 0
        %526 = vperm.xlu0 %525, %v523
        %v527 = vpop.permute.xlu0 %526
        %v529 = vmul.f32 %v522, %v527
        %v530 = vrot.slane %v529, 4
        %v531 = vadd.f32 %v529, %v530
        %v532 = vrot.slane %v531, 2
        %v533 = vadd.f32 %v531, %v532
        %v534 = vrot.slane %v533, 1
        %v535 = vadd.f32 %v533, %v534
        %v536 = vld [vmem:[#allocation2] sm:$0x1]
        %538 = vset.pattern.permute.xlu0 0
        %539 = vperm.xlu0 %538, %v536
        %v540 = vpop.permute.xlu0 %539
        %v542 = vlaneseq
        %v543 = vshrl.u32 %v542, 7
        %v544 = vsub.s32 0, %v543
        %v545 = vrot.slane %v540, %v544
        %v546 = vadd.f32 %v535, %v545
        %v547 = vxor.u32 %v546, 2147483648
        %v548 = vmul.f32 %v547, 1.442695
        %v549 = vpow.pop %v548
        %v550 = vadd.f32 %v549, 1.0
        %v551 = vrcp.pop %v550
        %v552 = vmul.f32 1.0, %v551
        %553 = vst [vmem:[%s279] sm:$0x1] %v552
        %s554 = sand.u32 %s188, 1
        %s555 = scalar_lea.sflag [#allocation4], %s554
        %s556 = sand.u32 %s188, 1
        %s557 = scalar_lea.vmem [#allocation3], %s556
        // Predicated region
        $region49: #{tpu_custom_call.1} parent=47 // pred_check
          %p558 = pneg %p198
        $region50: #{tpu_custom_call.1} parent=47 // pred_check_branch
          %560 = sbr.rel (%p558) target = $region52
        $region51: #{tpu_custom_call.1} parent=47 // pred_region
          %s562 = ssub.s32 16, 16
          %563 = vsyncadd %s555, %s562
          %s564 = smul.addr %s23, 16
          %s565 = scalar_lea.hbm %s7, %s564
          %s567 = sshll.u32 %s557, 4
          %s568 = int_to_ptr.vmem [resolvable:$true] %s567
          %570 = dma.vmem_to_hbm [thread:$0]  %s568, 16, %s565, %s555
        $region52: #{tpu_custom_call.1} parent=47 // pred_fallthru
          _
      $region48: #{tpu_custom_call.1} parent=5 // pred_fallthru
        _
      %p571 = scmp.le.s32.totalorder 2, %s18
      // Predicated region
      $region53: #{tpu_custom_call.1} parent=5 // pred_check
        %p572 = pneg %p571
      $region54: #{tpu_custom_call.1} parent=5 // pred_check_branch
        %574 = sbr.rel (%p572) target = $region56
      $region55: #{tpu_custom_call.1} parent=5 // pred_region
        %s575 = ssub.s32 %s18, 2
        // Predicated region
        $region57: #{tpu_custom_call.1} parent=55 // pred_check
          %p576 = pneg %p204
        $region58: #{tpu_custom_call.1} parent=55 // pred_check_branch
          %578 = sbr.rel (%p576) target = $region60
        $region59: #{tpu_custom_call.1} parent=55 // pred_region
          %s579 = sand.u32 %s189, 1
          %s580 = scalar_lea.sflag [#allocation4], %s579
          %s581 = sand.u32 %s189, 1
          %s582 = scalar_lea.vmem [#allocation3], %s581
          %583 = dma.done %s580, 16
        $region60: #{tpu_custom_call.1} parent=55 // pred_fallthru
          _
      $region56: #{tpu_custom_call.1} parent=5 // pred_fallthru
        _
    $region6: #{tpu_custom_call.1} parent=1 // loop_footer
      %s22 = sadd.s32 1, %s18
    $region7: #{tpu_custom_call.1} parent=1 // loop_footer_branch
      %17 = sbr.rel target = $region3
    $region8: #{tpu_custom_call.1} parent=1 // loop_exit
      _
    %584 = vsyncpa [#allocation4], 1
    %s585 = scalar_lea.sflag [#allocation4], 1
    %586 = vsyncpa %s585, 1

</llo_original>
